<compile_context>
chip_gen: v7x
topology: tpu7x:2x2x1
jax: 0.10.0
libtpu: 0.0.40
codegen_flags: <defaults>
</compile_context>

<pallas_src>
import functools
import math

import jax
import jax.numpy as jnp
from jax import lax
from jax.experimental import pallas as pl
from jax.experimental.pallas import tpu as pltpu


def build_positional_encoding_table(d_model: int, max_len: int = 5000) -> jnp.ndarray:
    """PyTorch-identical sinusoidal table, shape (max_len, 1, d_model), float32."""
    position = jnp.arange(max_len, dtype=jnp.float32)[:, None]
    div_term = jnp.exp(jnp.arange(0, d_model, 2, dtype=jnp.float32)
                       * (-math.log(10000.0) / d_model))
    angles = position * div_term
    pe = jnp.zeros((max_len, d_model), dtype=jnp.float32)
    pe = pe.at[:, 0::2].set(jnp.sin(angles))
    pe = pe.at[:, 1::2].set(jnp.cos(angles))
    return pe[:, None, :]


# ---------------------------------------------------------------------------
# Kernels
# ---------------------------------------------------------------------------
def _pos_enc_fused_kernel(x_ref, pos_ref, o_ref, *, d_model):
    """out = x + pe, pe generated on the fly.

    x_ref:   (TR, D) tile of the flattened (S*B, D) input.
    pos_ref: (TR, 1) f32 sequence position of each flattened row.
    Even columns get sin(pos*w_k), odd columns cos(pos*w_k); cos is expressed
    as sin(. + pi/2) so there is exactly one transcendental per output element
    (plus a (1, D) exp for the frequencies) -- all on the idle EUP slot.
    """
    col = lax.broadcasted_iota(jnp.int32, (1, d_model), 1)
    parity = (col & 1).astype(jnp.float32)                       # 0 even, 1 odd
    two_k = (col - (col & 1)).astype(jnp.float32)                # 2 * (col // 2)
    inv_freq = jnp.exp(two_k * (-math.log(10000.0) / d_model))   # (1, D)  EUP
    phase = parity * (0.5 * math.pi)                             # (1, D)
    pe = jnp.sin(pos_ref[...] * inv_freq + phase)                # (TR, D) EUP
    o_ref[...] = (x_ref[...].astype(jnp.float32) + pe).astype(o_ref.dtype)


def _pos_enc_table_kernel(x_ref, pe_ref, o_ref):
    """Fallback: out = x + pe with a precomputed per-row pe tile."""
    o_ref[...] = (x_ref[...].astype(jnp.float32) + pe_ref[...]).astype(o_ref.dtype)


# ---------------------------------------------------------------------------
# Tiling helpers
# ---------------------------------------------------------------------------
def _default_target_bytes() -> int:
    """Per-chip x-tile size.

    v7x (64 MiB VMEM/TC, ~3.2 TB/s HBM) wants ~8 MiB tiles to amortize the
    ~0.35us per-grid-step overhead; ~4 MiB already sits at the measured HBM
    roofline plateau on v5e/v6e (128 MiB VMEM).
    """
    try:
        info = pltpu.get_tpu_info()
        vmem = int(getattr(info, "vmem_capacity_bytes", 128 << 20))
    except Exception:
        vmem = 128 << 20
    return (8 << 20) if vmem <= (64 << 20) else (4 << 20)


def _choose_tile_rows(total_rows: int, x_row_bytes: int, vmem_row_bytes: int,
                      target_bytes: int, vmem_budget: int = 48 << 20) -> int:
    tr = max(8, int(target_bytes) // max(1, x_row_bytes))
    tr = min(tr, max(8, vmem_budget // max(1, vmem_row_bytes)))  # stay inside VMEM
    tr = min(tr, pl.cdiv(total_rows, 2))   # >= 2 grid steps -> both v7x TCs busy
    tr = max(8, (tr // 8) * 8)             # sublane granule
    return total_rows if tr >= total_rows else int(tr)


# ---------------------------------------------------------------------------
# Wrapper
# ---------------------------------------------------------------------------
_FUSED_PE_SUPPORTED = True   # flipped off once if in-kernel sin() fails to lower


def positional_encoding(x: jnp.ndarray, *, max_len: int = 5000,
                        tile_rows: int | None = None,
                        target_bytes: int | None = None) -> jnp.ndarray:
    """x: (seq_len, batch, d_model) -> x + pe[:seq_len] (pe computed in float32).

    Output dtype follows PyTorch promotion against the float32 pe buffer
    (float32 for f32/bf16/fp16 inputs).
    """
    global _FUSED_PE_SUPPORTED
    seq_len, batch, d_model = x.shape
    assert seq_len <= max_len, "seq_len exceeds max_len"

    out_dtype = jnp.promote_types(x.dtype, jnp.float32)
    out_itemsize = jnp.dtype(out_dtype).itemsize
    total_rows = seq_len * batch

    # Free row-major collapse: (S, B, D) -> (S*B, D); row s*B + b is position s.
    x2 = x.reshape(total_rows, d_model)
    x_row_bytes = d_model * x.dtype.itemsize
    if target_bytes is None:
        target_bytes = _default_target_bytes()

    def _tile(vmem_row_bytes: int) -> int:
        if tile_rows is not None:
            tr = max(1, min(int(tile_rows), total_rows))
            if tr < total_rows:                       # keep (8,128)-legal blocks
                tr = min(total_rows, ((tr + 7) // 8) * 8)
            return tr
        return _choose_tile_rows(total_rows, x_row_bytes, vmem_row_bytes,
                                 target_bytes)

    def _params(tr: int, vmem_row_bytes: int) -> pltpu.CompilerParams:
        return pltpu.CompilerParams(
            dimension_semantics=("parallel",),        # independent tiles
            vmem_limit_bytes=int(min(56 << 20,
                                     max(16 << 20,
                                         tr * vmem_row_bytes + (4 << 20)))),
        )

    def _row_spec(tr: int, width: int) -> pl.BlockSpec:
        return pl.BlockSpec((tr, width), lambda i: (i, 0))

    if _FUSED_PE_SUPPORTED:
        # Primary path: pe generated in-kernel; the only extra input is the
        # tiny per-row position vector.
        pos_ids = jnp.repeat(jnp.arange(seq_len, dtype=jnp.float32),
                             batch).reshape(total_rows, 1)
        vmem_row = 2 * (x_row_bytes + d_model * out_itemsize + 128 * 4)
        tr = _tile(vmem_row)
        try:
            out2 = pl.pallas_call(
                functools.partial(_pos_enc_fused_kernel, d_model=d_model),
                out_shape=jax.ShapeDtypeStruct((total_rows, d_model), out_dtype),
                grid_spec=pl.GridSpec(
                    grid=(pl.cdiv(total_rows, tr),),
                    in_specs=[_row_spec(tr, d_model), _row_spec(tr, 1)],
                    out_specs=_row_spec(tr, d_model),
                ),
                compiler_params=_params(tr, vmem_row),
                cost_estimate=pl.CostEstimate(
                    flops=3 * total_rows * d_model,
                    transcendentals=total_rows * d_model,
                    bytes_accessed=(total_rows
                                    * (x_row_bytes + d_model * out_itemsize)
                                    + total_rows * 4),
                ),
            )(x2, pos_ids)
            return out2.reshape(seq_len, batch, d_model)
        except Exception:
            # TODO(synk): drop this fallback once in-kernel sin() lowering is
            # confirmed on every target toolchain.
            _FUSED_PE_SUPPORTED = False

    # Fallback: build pe only for the needed seq_len rows (never the full
    # max_len table), expand over batch in the wrapper, stream as 2nd input.
    pos = jnp.arange(seq_len, dtype=jnp.float32)[:, None]
    div_term = jnp.exp(jnp.arange(0, d_model, 2, dtype=jnp.float32)
                       * (-math.log(10000.0) / d_model))
    ang = pos * div_term
    pe = jnp.zeros((seq_len, d_model), jnp.float32)
    pe = pe.at[:, 0::2].set(jnp.sin(ang)).at[:, 1::2].set(jnp.cos(ang))
    pe_rows = jnp.broadcast_to(pe[:, None, :],
                               (seq_len, batch, d_model)).reshape(total_rows, d_model)

    vmem_row = 2 * (x_row_bytes + d_model * 4 + d_model * out_itemsize)
    tr = _tile(vmem_row)
    out2 = pl.pallas_call(
        _pos_enc_table_kernel,
        out_shape=jax.ShapeDtypeStruct((total_rows, d_model), out_dtype),
        grid_spec=pl.GridSpec(
            grid=(pl.cdiv(total_rows, tr),),
            in_specs=[_row_spec(tr, d_model), _row_spec(tr, d_model)],
            out_specs=_row_spec(tr, d_model),
        ),
        compiler_params=_params(tr, vmem_row),
        cost_estimate=pl.CostEstimate(
            flops=total_rows * d_model, transcendentals=0,
            bytes_accessed=total_rows * (x_row_bytes + d_model * 4
                                         + d_model * out_itemsize),
        ),
    )(x2, pe_rows)
    return out2.reshape(seq_len, batch, d_model)


if __name__ == "__main__":
    d_model = 32
    max_len = 64
    seq_len = 8
    batch = 2

    key = jax.random.PRNGKey(0)
    k1, k2 = jax.random.split(key)
    x = jax.random.normal(k1, (seq_len, batch, d_model), dtype=jnp.float32)

    # 1) Auto tiling (picks an 8-row tile here -> 2-step pipelined grid).
    out = jax.block_until_ready(positional_encoding(x, max_len=max_len))
    # 2) Forced single full-extent tile.
    out_one = jax.block_until_ready(
        positional_encoding(x, max_len=max_len, tile_rows=seq_len * batch))
    # 3) Ragged shape: 5*3 = 15 flattened rows with an 8-row tile (masked tail).
    x_r = jax.random.normal(k2, (5, 3, d_model), dtype=jnp.float32)
    out_r = jax.block_until_ready(
        positional_encoding(x_r, max_len=max_len, tile_rows=8))

    # Reference against the exact PyTorch-style table.  atol=1e-4 absorbs the
    # tiny difference between the in-kernel sin(.+pi/2) / EUP approximations
    # and XLA's table-built sin/cos (observed error is orders below this).
    pe_tab = build_positional_encoding_table(d_model, max_len)
    ref = x + pe_tab[:seq_len]
    ref_r = x_r + pe_tab[:5]

    assert out.shape == x.shape and out.dtype == jnp.float32
    assert jnp.allclose(out, ref, atol=1e-4), "mismatch vs reference (auto tile)"
    assert jnp.allclose(out_one, ref, atol=1e-4), "mismatch vs reference (single tile)"
    assert jnp.allclose(out_r, ref_r, atol=1e-4), "mismatch vs reference (ragged)"

    print("KERNEL_OK")
</pallas_src>

<mosaic_0001>
module attributes {stable_mosaic.version = 11 : i64} {
  func.func @_pos_enc_fused_kernel(%arg0: i32, %arg1: memref<8x32xf32, #tpu.memory_space<vmem>>, %arg2: memref<8x1xf32, #tpu.memory_space<vmem>>, %arg3: memref<8x32xf32, #tpu.memory_space<vmem>>) attributes {dimension_semantics = [#tpu.dimension_semantics<parallel>], iteration_bounds = array<i64: 2>, scalar_prefetch = 0 : i64, scratch_operands = 0 : i64, tpu.core_type = #tpu.core_type<tc>, window_params = [{transform_indices = @transform_0, window_bounds = array<i64: 8, 32>}, {transform_indices = @transform_1, window_bounds = array<i64: 8, 1>}, {transform_indices = @transform_2, window_bounds = array<i64: 8, 32>}]} {
    %0 = tpu.iota {dimensions = array<i32: 1>} : vector<1x32xi32>
    %c1_i32 = arith.constant 1 : i32
    %1 = vector.broadcast %c1_i32 : i32 to vector<1x32xi32>
    %2 = arith.andi %0, %1 : vector<1x32xi32>
    %3 = arith.sitofp %2 : vector<1x32xi32> to vector<1x32xf32>
    %c1_i32_0 = arith.constant 1 : i32
    %4 = vector.broadcast %c1_i32_0 : i32 to vector<1x32xi32>
    %5 = arith.andi %0, %4 : vector<1x32xi32>
    %6 = arith.subi %0, %5 : vector<1x32xi32>
    %7 = arith.sitofp %6 : vector<1x32xi32> to vector<1x32xf32>
    %cst = arith.constant -0.287823141 : f32
    %8 = vector.broadcast %cst : f32 to vector<1x32xf32>
    %9 = arith.mulf %7, %8 : vector<1x32xf32>
    %10 = math.exp %9 : vector<1x32xf32>
    %cst_1 = arith.constant 1.57079637 : f32
    %11 = vector.broadcast %cst_1 : f32 to vector<1x32xf32>
    %12 = arith.mulf %3, %11 : vector<1x32xf32>
    %c0 = arith.constant 0 : index
    %c0_2 = arith.constant 0 : index
    %13 = vector.load %arg2[%c0, %c0_2] : memref<8x1xf32, #tpu.memory_space<vmem>>, vector<8x1xf32>
    %14 = vector.broadcast %13 : vector<8x1xf32> to vector<8x32xf32>
    %15 = vector.broadcast %10 : vector<1x32xf32> to vector<8x32xf32>
    %16 = arith.mulf %14, %15 : vector<8x32xf32>
    %17 = vector.broadcast %12 : vector<1x32xf32> to vector<8x32xf32>
    %18 = arith.addf %16, %17 : vector<8x32xf32>
    %19 = math.sin %18 : vector<8x32xf32>
    %c0_3 = arith.constant 0 : index
    %c0_4 = arith.constant 0 : index
    %20 = vector.load %arg1[%c0_3, %c0_4] : memref<8x32xf32, #tpu.memory_space<vmem>>, vector<8x32xf32>
    %21 = arith.addf %20, %19 : vector<8x32xf32>
    %c0_5 = arith.constant 0 : index
    %c0_6 = arith.constant 0 : index
    %22 = vector.load %arg3[%c0_5, %c0_6] : memref<8x32xf32, #tpu.memory_space<vmem>>, vector<8x32xf32>
    tpu.vector_store %arg3[%c0_5, %c0_6], %21 {strides = array<i32>} : memref<8x32xf32, #tpu.memory_space<vmem>>, vector<8x32xf32>,
    return
  }
  func.func @transform_0(%arg0: i32) -> (i32, i32) {
    %c0_i32 = arith.constant 0 : i32
    %c0_i32_0 = arith.constant 0 : i32
    return %arg0, %c0_i32 : i32, i32
  }
  func.func @transform_1(%arg0: i32) -> (i32, i32) {
    %c0_i32 = arith.constant 0 : i32
    %c0_i32_0 = arith.constant 0 : i32
    return %arg0, %c0_i32 : i32, i32
  }
  func.func @transform_2(%arg0: i32) -> (i32, i32) {
    %c0_i32 = arith.constant 0 : i32
    %c0_i32_0 = arith.constant 0 : i32
    return %arg0, %c0_i32 : i32, i32
  }
}

module attributes {stable_mosaic.version = 11 : i64} {
  func.func @_pos_enc_table_kernel(%arg0: i32, %arg1: memref<8x32xf32, #tpu.memory_space<vmem>>, %arg2: memref<8x32xf32, #tpu.memory_space<vmem>>, %arg3: memref<8x32xf32, #tpu.memory_space<vmem>>) attributes {dimension_semantics = [#tpu.dimension_semantics<parallel>], iteration_bounds = array<i64: 2>, scalar_prefetch = 0 : i64, scratch_operands = 0 : i64, tpu.core_type = #tpu.core_type<tc>, window_params = [{transform_indices = @transform_0, window_bounds = array<i64: 8, 32>}, {transform_indices = @transform_1, window_bounds = array<i64: 8, 32>}, {transform_indices = @transform_2, window_bounds = array<i64: 8, 32>}]} {
    %c0 = arith.constant 0 : index
    %c0_0 = arith.constant 0 : index
    %0 = vector.load %arg1[%c0, %c0_0] : memref<8x32xf32, #tpu.memory_space<vmem>>, vector<8x32xf32>
    %c0_1 = arith.constant 0 : index
    %c0_2 = arith.constant 0 : index
    %1 = vector.load %arg2[%c0_1, %c0_2] : memref<8x32xf32, #tpu.memory_space<vmem>>, vector<8x32xf32>
    %2 = arith.addf %0, %1 : vector<8x32xf32>
    %c0_3 = arith.constant 0 : index
    %c0_4 = arith.constant 0 : index
    %3 = vector.load %arg3[%c0_3, %c0_4] : memref<8x32xf32, #tpu.memory_space<vmem>>, vector<8x32xf32>
    tpu.vector_store %arg3[%c0_3, %c0_4], %2 {strides = array<i32>} : memref<8x32xf32, #tpu.memory_space<vmem>>, vector<8x32xf32>,
    return
  }
  func.func @transform_0(%arg0: i32) -> (i32, i32) {
    %c0_i32 = arith.constant 0 : i32
    %c0_i32_0 = arith.constant 0 : i32
    return %arg0, %c0_i32 : i32, i32
  }
  func.func @transform_1(%arg0: i32) -> (i32, i32) {
    %c0_i32 = arith.constant 0 : i32
    %c0_i32_0 = arith.constant 0 : i32
    return %arg0, %c0_i32 : i32, i32
  }
  func.func @transform_2(%arg0: i32) -> (i32, i32) {
    %c0_i32 = arith.constant 0 : i32
    %c0_i32_0 = arith.constant 0 : i32
    return %arg0, %c0_i32 : i32, i32
  }
}

</mosaic_0001>

<llo_original>
// kernel: tpu_custom_call.1
$region0: #{tpu_custom_call.1}
  #allocation0 [shape = 'u32[]', space=smem, size = 0x4, offset = 0x4, fixed_abs, tag = 'smem constant byte address 0x4 - core index']
  #allocation1 [shape = 'u32[144,128]{1,0:T(1,128)}', space=vmem, size = 0x12000, scoped, tag = 'internal scratch']
  %s0 = inlined_call_operand.vmem [shape: f32[16,32], index: 0, kind: input, shape index: {}]
  %s1 = inlined_call_operand.vmem [shape: f32[16,1], index: 1, kind: input, shape index: {}]
  %s2 = inlined_call_operand.hbm [shape: f32[16,32], index: 2, kind: output, shape index: {}]
  %s3 = sld [smem:[#allocation0]]
  $region41: #{tpu_custom_call.1} parent=0
    _
  %s5 = ssub.s32 1, %s3
  %s6 = scalar_select 0, %s5, %s3
  $region1: #{tpu_custom_call.1} parent=0
    #allocation2 [shape = 'u8[8192]{0}', space=vmem, size = 0x2000, scoped, tag = 'output window, operand 0']
    #allocation3 [shape = 's32[2]{0}', space=sflag, size = 0x8, scoped, tag = 'scoped memory for tpu_custom_call.1']
    %7 = vsyncpa [#allocation3], 0
    %s8 = scalar_lea.sflag [#allocation3], 1
    %9 = vsyncpa %s8, 0
    loop: start=0, step=1, limit=4
    $region2: #{tpu_custom_call.1} parent=1 // loop_pre_header
      _
    $region3: #{tpu_custom_call.1} parent=1 // loop_header
      %s11 = sphi 0, %s15
      %p12 = scmp.ge.s32.totalorder %s11, 4
      %s21 = sphi 0, %s23
      %s24 = sphi 0, %s21
      %s25 = sphi 0, %s24
      %s41 = sphi 0, %s25
      %s47 = sphi 0, %s49
      %s50 = sphi 0, %s47
      %s51 = sphi 0, %s50
      %s67 = sphi 0, %s51
      %s73 = sphi 0, %s75
      %s76 = sphi 0, %s73
      %s77 = sphi 0, %s76
      %s93 = sphi 0, %s77
    $region4: #{tpu_custom_call.1} parent=1 // loop_header_branch
      %14 = sbr.rel (%p12) target = $region8
    $region5: #{tpu_custom_call.1} parent=1 // loop_body
      %s16 = ssub.s32 %s11, 1
      %s17 = ssub.s32 %s11, 2
      %s18 = sadd.s32 %s11, 1
      %s19 = ssub.s32 %s11, %s18
      %p20 = scmp.eq.s32.totalorder %s19, 0
      %s22 = sadd.s32 %s21, 1
      %s23 = scalar_select %p20, %s21, %s22
      %p26 = pneg %p20
      %p27 = scmp.eq.s32.totalorder %s11, 1
      %p28 = por %p26, %p27
      %p29 = scmp.ne.s32.totalorder %s21, %s24
      %p30 = scmp.eq.s32.totalorder %s11, 0
      %p31 = por %p29, %p30
      %p32 = scmp.ne.s32.totalorder %s21, %s24
      %p33 = scmp.eq.s32.totalorder %s16, 1
      %p34 = por %p32, %p33
      %p35 = scmp.ne.s32.totalorder %s24, %s25
      %p36 = scmp.eq.s32.totalorder %s16, 0
      %p37 = por %p35, %p36
      %p38 = scmp.ne.s32.totalorder %s24, %s25
      %p39 = scmp.eq.s32.totalorder %s17, 1
      %p40 = por %p38, %p39
      %p42 = scmp.ne.s32.totalorder %s25, %s41
      %p43 = scmp.eq.s32.totalorder %s17, 0
      %p44 = por %p42, %p43
      %s45 = ssub.s32 %s11, %s18
      %p46 = scmp.eq.s32.totalorder %s45, 0
      %s48 = sadd.s32 %s47, 1
      %s49 = scalar_select %p46, %s47, %s48
      %p52 = pneg %p46
      %p53 = scmp.eq.s32.totalorder %s11, 1
      %p54 = por %p52, %p53
      %p55 = scmp.ne.s32.totalorder %s47, %s50
      %p56 = scmp.eq.s32.totalorder %s11, 0
      %p57 = por %p55, %p56
      %p58 = scmp.ne.s32.totalorder %s47, %s50
      %p59 = scmp.eq.s32.totalorder %s16, 1
      %p60 = por %p58, %p59
      %p61 = scmp.ne.s32.totalorder %s50, %s51
      %p62 = scmp.eq.s32.totalorder %s16, 0
      %p63 = por %p61, %p62
      %p64 = scmp.ne.s32.totalorder %s50, %s51
      %p65 = scmp.eq.s32.totalorder %s17, 1
      %p66 = por %p64, %p65
      %p68 = scmp.ne.s32.totalorder %s51, %s67
      %p69 = scmp.eq.s32.totalorder %s17, 0
      %p70 = por %p68, %p69
      %s71 = ssub.s32 %s11, %s18
      %p72 = scmp.eq.s32.totalorder %s71, 0
      %s74 = sadd.s32 %s73, 1
      %s75 = scalar_select %p72, %s73, %s74
      %p78 = pneg %p72
      %p79 = scmp.eq.s32.totalorder %s11, 1
      %p80 = por %p78, %p79
      %p81 = scmp.ne.s32.totalorder %s73, %s76
      %p82 = scmp.eq.s32.totalorder %s11, 0
      %p83 = por %p81, %p82
      %p84 = scmp.ne.s32.totalorder %s73, %s76
      %p85 = scmp.eq.s32.totalorder %s16, 1
      %p86 = por %p84, %p85
      %p87 = scmp.ne.s32.totalorder %s76, %s77
      %p88 = scmp.eq.s32.totalorder %s16, 0
      %p89 = por %p87, %p88
      %p90 = scmp.ne.s32.totalorder %s76, %s77
      %p91 = scmp.eq.s32.totalorder %s17, 1
      %p92 = por %p90, %p91
      %p94 = scmp.ne.s32.totalorder %s77, %s93
      %p95 = scmp.eq.s32.totalorder %s17, 0
      %p96 = por %p94, %p95
      %p97 = scmp.le.s32.totalorder 1, %s11
      %p98 = scmp.lt.s32.totalorder %s11, 3
      %p99 = pnand %p97, %p98
      %p100 = pneg %p99
      // Predicated region
      $region9: #{tpu_custom_call.1} parent=5 // pred_check
        _
      $region10: #{tpu_custom_call.1} parent=5 // pred_check_branch
        %102 = sbr.rel (%p99) target = $region12
      $region11: #{tpu_custom_call.1} parent=5 // pred_region
        %s103 = ssub.s32 %s11, 1
      $region12: #{tpu_custom_call.1} parent=5 // pred_fallthru
        _
      %p104 = scmp.lt.s32.totalorder %s11, 2
      // Predicated region
      $region13: #{tpu_custom_call.1} parent=5 // pred_check
        %p105 = pneg %p104
      $region14: #{tpu_custom_call.1} parent=5 // pred_check_branch
        %107 = sbr.rel (%p105) target = $region16
      $region15: #{tpu_custom_call.1} parent=5 // pred_region
        // Predicated region
        $region17: #{tpu_custom_call.1} parent=15 // pred_check
          %p108 = pneg %p31
        $region18: #{tpu_custom_call.1} parent=15 // pred_check_branch
          %110 = sbr.rel (%p108) target = $region20
        $region19: #{tpu_custom_call.1} parent=15 // pred_region
          %p111 = scmp.lt.s32.totalorder %s11, 1
          %s112 = scalar_select %p111, %s11, 1
          %s113 = smul.addr %s112, 8
          %s114 = scalar_lea.vmem %s0, %s113
        $region20: #{tpu_custom_call.1} parent=15 // pred_fallthru
          _
        // Predicated region
        $region21: #{tpu_custom_call.1} parent=15 // pred_check
          %p115 = pneg %p57
        $region22: #{tpu_custom_call.1} parent=15 // pred_check_branch
          %117 = sbr.rel (%p115) target = $region24
        $region23: #{tpu_custom_call.1} parent=15 // pred_region
          %p118 = scmp.lt.s32.totalorder %s11, 1
          %s119 = scalar_select %p118, %s11, 1
          %s120 = smul.addr %s119, 8
          %s121 = scalar_lea.vmem %s1, %s120
        $region24: #{tpu_custom_call.1} parent=15 // pred_fallthru
          _
      $region16: #{tpu_custom_call.1} parent=5 // pred_fallthru
        _
      %p122 = scmp.le.s32.totalorder 1, %s11
      %p123 = scmp.lt.s32.totalorder %s11, 3
      %p124 = pnand %p122, %p123
      %p125 = pneg %p124
      // Predicated region
      $region25: #{tpu_custom_call.1} parent=5 // pred_check
        _
      $region26: #{tpu_custom_call.1} parent=5 // pred_check_branch
        %127 = sbr.rel (%p124) target = $region28
      $region27: #{tpu_custom_call.1} parent=5 // pred_region
        %s128 = ssub.s32 %s11, 1
        %p129 = scmp.lt.s32.totalorder %s16, 1
        %s130 = scalar_select %p129, %s16, 1
        %s131 = smul.addr %s130, 8
        %s132 = scalar_lea.vmem %s0, %s131
        %p133 = pneg %p37
        %p134 = pneg %p34
        %p135 = scmp.lt.s32.totalorder %s16, 1
        %s136 = scalar_select %p135, %s16, 1
        %s137 = smul.addr %s136, 8
        %s138 = scalar_lea.vmem %s1, %s137
        %p139 = pneg %p63
        %p140 = pneg %p60
        %p141 = pneg %p89
        %p142 = pneg %p86
        %s143 = sand.u32 %s76, 1
        %s144 = scalar_lea.sflag [#allocation3], %s143
        %s145 = sand.u32 %s76, 1
        %s146 = smul.addr %s145, 8
        %s147 = scalar_lea.vmem [#allocation2], %s146
        %p148 = scmp.lt.s32.totalorder %s16, 1
        %s149 = scalar_select %p148, %s16, 1
        %s150 = smul.addr %s149, 8
        %s151 = scalar_lea.vmem %s0, %s150
        %p152 = scmp.lt.s32.totalorder %s16, 1
        %s153 = scalar_select %p152, %s16, 1
        %s154 = smul.addr %s153, 8
        %s155 = scalar_lea.vmem %s1, %s154
        %v156 = vlaneseq
        %v157 = vand.u32 %v156, 127
        %v158 = vand.u32 %v157, 1
        %v159 = vcvt.s32.f32 %v158
        %v160 = vsub.s32 %v157, %v158
        %v161 = vcvt.s32.f32 %v160
        %v162 = vmul.f32 %v161, -0.28782314
        %v163 = vmul.f32 %v162, 1.442695
        %v164 = vpow.pop %v163
        %v165 = vmul.f32 %v159, 1.5707964
        %v166 = vld [vmem:[%s155] sm:$0xff]
        %168 = vset.pattern.permute.xlu0 0
        %169 = vperm.xlu0 %168, %v166
        %v170 = vpop.permute.xlu0 %169
        %v172 = vmul.f32 %v170, %v164
        %v173 = vadd.f32 %v172, %v165
        %v174 = vand.u32 2147483647, %v173
        %vm175 = vcmp.le.f32.partialorder %v174, 0.7853982
        %vm176 = vcmp.lt.s32.totalorder %v173, 0
        %v177 = vand.u32 %v173, 2139095040
        %v178 = vshrl.u32 %v177, 23
        %v179 = vsub.s32 %v178, 127
        %v180 = vand.u32 2147483647, %v173
        %v181 = vand.u32 %v180, 8388607
        %v182 = vor.u32 %v181, 8388608
        %v183 = vsub.s32 0, %v182
        %v184 = vadd.s32 %v179, 1
        %vm185 = vcmp.gt.s32.totalorder %v184, 0
        %v186 = vsel %vm185, %v184, 0
        %v187 = vshrl.u32 %v186, 5
        %v188 = vand.u32 %v186, 31
        %v189 = vsub.s32 32, %v188
        %v190 = vshrl.u32 683565275, %v189
        %v191 = vshll.u32 683565275, %v188
        %v192 = vshrl.u32 2475754826, %v189
        %v193 = vor.u32 %v191, %v192
        %v194 = vshll.u32 2475754826, %v188
        %v195 = vshrl.u32 2131351028, %v189
        %v196 = vor.u32 %v194, %v195
        %v197 = vshll.u32 2131351028, %v188
        %v198 = vshrl.u32 2102212464, %v189
        %v199 = vor.u32 %v197, %v198
        %v200 = vshll.u32 2102212464, %v188
        %v201 = vshrl.u32 920167782, %v189
        %v202 = vor.u32 %v200, %v201
        %v203 = vshll.u32 920167782, %v188
        %v204 = vshrl.u32 1326507024, %v189
        %v205 = vor.u32 %v203, %v204
        %vm206 = vcmp.lt.s32.totalorder %v187, 1
        %vm207 = vcmp.lt.s32.totalorder %v187, 2
        %vm208 = vcmp.lt.s32.totalorder %v187, 3
        %vm209 = vcmp.lt.s32.totalorder %v187, 4
        %v210 = vsel %vm206, %v190, %v193
        %v211 = vsel %vm209, %v199, 2102212464
        %v212 = vsel %vm208, %v196, %v211
        %v213 = vsel %vm207, %v210, %v212
        %v214 = vsel %vm206, %v193, %v196
        %v215 = vsel %vm209, %v202, 920167782
        %v216 = vsel %vm208, %v199, %v215
        %v217 = vsel %vm207, %v214, %v216
        %v218 = vsel %vm206, %v196, %v199
        %v219 = vsel %vm209, %v205, 1326507024
        %v220 = vsel %vm208, %v202, %v219
        %v221 = vsel %vm207, %v218, %v220
        %v222 = vshll.u32 %v182, 8
        %v223 = vmul.u32.u64.compose %v222, %v221
        %v224 = vextract.low.u32 %v223
        %v225 = vextract.high.u32 %v223
        %v226 = vmul.u32.u64.compose %v222, %v217
        %v227 = vextract.low.u32 %v226
        %v228 = vextract.high.u32 %v226
        %v229 = vmul.u32 %v222, %v213
        %v230 = vadd.s32 %v225, %v227
        %vm231 = vc.u32 %v225, %v227
        %v232 = vadd.s32 %v228, 1
        %v233 = vsel %vm231, %v232, %v228
        %v234 = vadd.s32 %v229, %v233
        %v235 = vadd.s32 %v234, 536870912
        %v236 = vshrl.u32 %v235, 30
        %v237 = vshll.u32 %v236, 30
        %v238 = vsub.s32 %v234, %v237
        %vm239 = vcmp.lt.s32.totalorder %v238, 0
        %v240 = vsub.s32 0, %v238
        %v241 = vsel %vm239, %v240, %v238
        %v242 = vclz %v241
        %v243 = vsub.s32 %v242, 2
        %vm244 = vcmp.gt.s32.totalorder 0, %v243
        %v245 = vsel %vm244, 0, %v243
        %v246 = vsub.s32 32, %v245
        %v247 = vshll.u32 %v238, %v245
        %v248 = vshrl.u32 %v230, %v246
        %v249 = vor.u32 %v247, %v248
        %v250 = vsub.s32 4294967266, %v245
        %v251 = vadd.s32 %v250, 127
        %v252 = vshll.u32 %v251, 23
        %v253 = vor.u32 4788187, %v252
        %v254 = vand.u32 2147483647, %v253
        %v256 = vcvt.s32.f32 %v249
        %v257 = vmul.f32 %v256, %v254
        %v258 = vxor.u32 %v257, 2147483648
        %v259 = vsel %vm176, %v258, %v257
        %v260 = vsub.s32 4, %v236
        %v261 = vsel %vm176, %v260, %v236
        %v262 = vsel %vm175, %v173, %v259
        %v263 = vsel %vm175, 0, %v261
        %v264 = vcosq.f32.pop %v262
        %v265 = vsinq.f32.pop %v262
        %vm266 = vweird.f32 %v173
        %v267 = vadd.s32 %v263, 3
        %v268 = vand.u32 %v267, 3
        %vm269 = vcmp.lt.s32.totalorder %v268, 2
        %vm270 = vcmp.eq.s32.totalorder %v268, 0
        %v271 = vxor.u32 %v265, 2147483648
        %v272 = vsel %vm270, %v264, %v271
        %vm273 = vcmp.eq.s32.totalorder %v268, 2
        %v274 = vxor.u32 %v264, 2147483648
        %v275 = vsel %vm273, %v274, %v265
        %v276 = vsel %vm269, %v272, %v275
        %v277 = vsel %vm266, nan, %v276
        %v278 = vld [vmem:[%s151] sm:$0xff]
        %v279 = vadd.f32 %v278, %v277
        %vm280 = vcmask 261120
        %281 = vst.msk [vmem:[%s147] sm:$0xff] %vm280, %v279
        %s282 = sand.u32 %s76, 1
        %s283 = scalar_lea.sflag [#allocation3], %s282
        %s284 = sand.u32 %s76, 1
        %s285 = smul.addr %s284, 8
        %s286 = scalar_lea.vmem [#allocation2], %s285
        // Predicated region
        $region29: #{tpu_custom_call.1} parent=27 // pred_check
          %p287 = pneg %p86
        $region30: #{tpu_custom_call.1} parent=27 // pred_check_branch
          %289 = sbr.rel (%p287) target = $region32
        $region31: #{tpu_custom_call.1} parent=27 // pred_region
          %s291 = ssub.s32 128, 128
          %292 = vsyncadd %s283, %s291
          %s293 = smul.addr %s16, 128
          %s294 = scalar_lea.hbm %s2, %s293
          %s296 = sshll.u32 %s286, 4
          %s297 = int_to_ptr.vmem [resolvable:$true] %s296
          %299 = dma.vmem_to_hbm [thread:$0]  %s297, 128, %s294, %s283
        $region32: #{tpu_custom_call.1} parent=27 // pred_fallthru
          _
      $region28: #{tpu_custom_call.1} parent=5 // pred_fallthru
        _
      %p300 = scmp.le.s32.totalorder 2, %s11
      // Predicated region
      $region33: #{tpu_custom_call.1} parent=5 // pred_check
        %p301 = pneg %p300
      $region34: #{tpu_custom_call.1} parent=5 // pred_check_branch
        %303 = sbr.rel (%p301) target = $region36
      $region35: #{tpu_custom_call.1} parent=5 // pred_region
        %s304 = ssub.s32 %s11, 2
        // Predicated region
        $region37: #{tpu_custom_call.1} parent=35 // pred_check
          %p305 = pneg %p92
        $region38: #{tpu_custom_call.1} parent=35 // pred_check_branch
          %307 = sbr.rel (%p305) target = $region40
        $region39: #{tpu_custom_call.1} parent=35 // pred_region
          %s308 = sand.u32 %s77, 1
          %s309 = scalar_lea.sflag [#allocation3], %s308
          %s310 = sand.u32 %s77, 1
          %s311 = smul.addr %s310, 8
          %s312 = scalar_lea.vmem [#allocation2], %s311
          %313 = dma.done %s309, 128
        $region40: #{tpu_custom_call.1} parent=35 // pred_fallthru
          _
      $region36: #{tpu_custom_call.1} parent=5 // pred_fallthru
        _
    $region6: #{tpu_custom_call.1} parent=1 // loop_footer
      %s15 = sadd.s32 1, %s11
    $region7: #{tpu_custom_call.1} parent=1 // loop_footer_branch
      %10 = sbr.rel target = $region3
    $region8: #{tpu_custom_call.1} parent=1 // loop_exit
      _
    %314 = vsyncpa [#allocation3], 1
    %s315 = scalar_lea.sflag [#allocation3], 1
    %316 = vsyncpa %s315, 1

// kernel: tpu_custom_call.1
$region0: #{tpu_custom_call.1}
  #allocation0 [shape = 'u32[]', space=smem, size = 0x4, offset = 0x4, fixed_abs, tag = 'smem constant byte address 0x4 - core index']
  #allocation1 [shape = 'u32[144,128]{1,0:T(1,128)}', space=vmem, size = 0x12000, scoped, tag = 'internal scratch']
  %s0 = inlined_call_operand.hbm [shape: f32[16,32], index: 0, kind: input, shape index: {}]
  %s1 = inlined_call_operand.hbm [shape: f32[16,32], index: 1, kind: input, shape index: {}]
  %s2 = inlined_call_operand.hbm [shape: f32[16,32], index: 2, kind: output, shape index: {}]
  %s3 = sld [smem:[#allocation0]]
  $region49: #{tpu_custom_call.1} parent=0
    _
  %s5 = ssub.s32 1, %s3
  %s6 = scalar_select 0, %s5, %s3
  $region1: #{tpu_custom_call.1} parent=0
    #allocation2 [shape = 'u8[8192]{0}', space=vmem, size = 0x2000, scoped, tag = 'input window, operand 0']
    #allocation3 [shape = 's32[2]{0}', space=sflag, size = 0x8, scoped, tag = 'scoped memory for tpu_custom_call.1']
    #allocation4 [shape = 's32[2]{0}', space=sflag, size = 0x8, scoped, tag = 'scoped memory for tpu_custom_call.1']
    #allocation5 [shape = 'u8[8192]{0}', space=vmem, size = 0x2000, scoped, tag = 'input window, operand 1']
    #allocation6 [shape = 's32[2]{0}', space=sflag, size = 0x8, scoped, tag = 'scoped memory for tpu_custom_call.1']
    #allocation7 [shape = 'u8[8192]{0}', space=vmem, size = 0x2000, scoped, tag = 'output window, operand 0']
    %7 = vsyncpa [#allocation3], 0
    %s8 = scalar_lea.sflag [#allocation3], 1
    %9 = vsyncpa %s8, 0
    %10 = vsyncpa [#allocation6], 0
    %s11 = scalar_lea.sflag [#allocation6], 1
    %12 = vsyncpa %s11, 0
    %13 = vsyncpa [#allocation4], 0
    %s14 = scalar_lea.sflag [#allocation4], 1
    %15 = vsyncpa %s14, 0
    loop: start=0, step=1, limit=4
    $region2: #{tpu_custom_call.1} parent=1 // loop_pre_header
      _
    $region3: #{tpu_custom_call.1} parent=1 // loop_header
      %s17 = sphi 0, %s21
      %p18 = scmp.ge.s32.totalorder %s17, 4
      %s27 = sphi 0, %s29
      %s30 = sphi 0, %s27
      %s31 = sphi 0, %s30
      %s47 = sphi 0, %s31
      %s53 = sphi 0, %s55
      %s56 = sphi 0, %s53
      %s57 = sphi 0, %s56
      %s73 = sphi 0, %s57
      %s79 = sphi 0, %s81
      %s82 = sphi 0, %s79
      %s83 = sphi 0, %s82
      %s99 = sphi 0, %s83
    $region4: #{tpu_custom_call.1} parent=1 // loop_header_branch
      %20 = sbr.rel (%p18) target = $region8
    $region5: #{tpu_custom_call.1} parent=1 // loop_body
      %s22 = ssub.s32 %s17, 1
      %s23 = ssub.s32 %s17, 2
      %s24 = sadd.s32 %s17, 1
      %s25 = ssub.s32 %s17, %s24
      %p26 = scmp.eq.s32.totalorder %s25, 0
      %s28 = sadd.s32 %s27, 1
      %s29 = scalar_select %p26, %s27, %s28
      %p32 = pneg %p26
      %p33 = scmp.eq.s32.totalorder %s17, 1
      %p34 = por %p32, %p33
      %p35 = scmp.ne.s32.totalorder %s27, %s30
      %p36 = scmp.eq.s32.totalorder %s17, 0
      %p37 = por %p35, %p36
      %p38 = scmp.ne.s32.totalorder %s27, %s30
      %p39 = scmp.eq.s32.totalorder %s22, 1
      %p40 = por %p38, %p39
      %p41 = scmp.ne.s32.totalorder %s30, %s31
      %p42 = scmp.eq.s32.totalorder %s22, 0
      %p43 = por %p41, %p42
      %p44 = scmp.ne.s32.totalorder %s30, %s31
      %p45 = scmp.eq.s32.totalorder %s23, 1
      %p46 = por %p44, %p45
      %p48 = scmp.ne.s32.totalorder %s31, %s47
      %p49 = scmp.eq.s32.totalorder %s23, 0
      %p50 = por %p48, %p49
      %s51 = ssub.s32 %s17, %s24
      %p52 = scmp.eq.s32.totalorder %s51, 0
      %s54 = sadd.s32 %s53, 1
      %s55 = scalar_select %p52, %s53, %s54
      %p58 = pneg %p52
      %p59 = scmp.eq.s32.totalorder %s17, 1
      %p60 = por %p58, %p59
      %p61 = scmp.ne.s32.totalorder %s53, %s56
      %p62 = scmp.eq.s32.totalorder %s17, 0
      %p63 = por %p61, %p62
      %p64 = scmp.ne.s32.totalorder %s53, %s56
      %p65 = scmp.eq.s32.totalorder %s22, 1
      %p66 = por %p64, %p65
      %p67 = scmp.ne.s32.totalorder %s56, %s57
      %p68 = scmp.eq.s32.totalorder %s22, 0
      %p69 = por %p67, %p68
      %p70 = scmp.ne.s32.totalorder %s56, %s57
      %p71 = scmp.eq.s32.totalorder %s23, 1
      %p72 = por %p70, %p71
      %p74 = scmp.ne.s32.totalorder %s57, %s73
      %p75 = scmp.eq.s32.totalorder %s23, 0
      %p76 = por %p74, %p75
      %s77 = ssub.s32 %s17, %s24
      %p78 = scmp.eq.s32.totalorder %s77, 0
      %s80 = sadd.s32 %s79, 1
      %s81 = scalar_select %p78, %s79, %s80
      %p84 = pneg %p78
      %p85 = scmp.eq.s32.totalorder %s17, 1
      %p86 = por %p84, %p85
      %p87 = scmp.ne.s32.totalorder %s79, %s82
      %p88 = scmp.eq.s32.totalorder %s17, 0
      %p89 = por %p87, %p88
      %p90 = scmp.ne.s32.totalorder %s79, %s82
      %p91 = scmp.eq.s32.totalorder %s22, 1
      %p92 = por %p90, %p91
      %p93 = scmp.ne.s32.totalorder %s82, %s83
      %p94 = scmp.eq.s32.totalorder %s22, 0
      %p95 = por %p93, %p94
      %p96 = scmp.ne.s32.totalorder %s82, %s83
      %p97 = scmp.eq.s32.totalorder %s23, 1
      %p98 = por %p96, %p97
      %p100 = scmp.ne.s32.totalorder %s83, %s99
      %p101 = scmp.eq.s32.totalorder %s23, 0
      %p102 = por %p100, %p101
      %p103 = scmp.le.s32.totalorder 1, %s17
      %p104 = scmp.lt.s32.totalorder %s17, 3
      %p105 = pnand %p103, %p104
      %p106 = pneg %p105
      // Predicated region
      $region9: #{tpu_custom_call.1} parent=5 // pred_check
        _
      $region10: #{tpu_custom_call.1} parent=5 // pred_check_branch
        %108 = sbr.rel (%p105) target = $region12
      $region11: #{tpu_custom_call.1} parent=5 // pred_region
        %s109 = ssub.s32 %s17, 1
      $region12: #{tpu_custom_call.1} parent=5 // pred_fallthru
        _
      %p110 = scmp.lt.s32.totalorder %s17, 2
      // Predicated region
      $region13: #{tpu_custom_call.1} parent=5 // pred_check
        %p111 = pneg %p110
      $region14: #{tpu_custom_call.1} parent=5 // pred_check_branch
        %113 = sbr.rel (%p111) target = $region16
      $region15: #{tpu_custom_call.1} parent=5 // pred_region
        // Predicated region
        $region17: #{tpu_custom_call.1} parent=15 // pred_check
          %p114 = pneg %p37
        $region18: #{tpu_custom_call.1} parent=15 // pred_check_branch
          %116 = sbr.rel (%p114) target = $region20
        $region19: #{tpu_custom_call.1} parent=15 // pred_region
          %s117 = sand.u32 %s27, 1
          %s118 = scalar_lea.sflag [#allocation3], %s117
          %s119 = sand.u32 %s27, 1
          %s120 = smul.addr %s119, 8
          %s121 = scalar_lea.vmem [#allocation2], %s120
          %s123 = ssub.s32 128, 128
          %124 = vsyncadd %s118, %s123
          %s125 = smul.addr %s17, 128
          %s126 = scalar_lea.hbm %s0, %s125
          %s128 = sshll.u32 %s121, 4
          %s129 = int_to_ptr.vmem [resolvable:$true] %s128
          %131 = dma.hbm_to_vmem [thread:$0]  %s126, 128, %s129, %s118
        $region20: #{tpu_custom_call.1} parent=15 // pred_fallthru
          _
        // Predicated region
        $region21: #{tpu_custom_call.1} parent=15 // pred_check
          %p132 = pneg %p63
        $region22: #{tpu_custom_call.1} parent=15 // pred_check_branch
          %134 = sbr.rel (%p132) target = $region24
        $region23: #{tpu_custom_call.1} parent=15 // pred_region
          %s135 = sand.u32 %s53, 1
          %s136 = scalar_lea.sflag [#allocation6], %s135
          %s137 = sand.u32 %s53, 1
          %s138 = smul.addr %s137, 8
          %s139 = scalar_lea.vmem [#allocation5], %s138
          %s141 = ssub.s32 128, 128
          %142 = vsyncadd %s136, %s141
          %s143 = smul.addr %s17, 128
          %s144 = scalar_lea.hbm %s1, %s143
          %s146 = sshll.u32 %s139, 4
          %s147 = int_to_ptr.vmem [resolvable:$true] %s146
          %149 = dma.hbm_to_vmem [thread:$0]  %s144, 128, %s147, %s136
        $region24: #{tpu_custom_call.1} parent=15 // pred_fallthru
          _
      $region16: #{tpu_custom_call.1} parent=5 // pred_fallthru
        _
      %p150 = scmp.le.s32.totalorder 1, %s17
      %p151 = scmp.lt.s32.totalorder %s17, 3
      %p152 = pnand %p150, %p151
      %p153 = pneg %p152
      // Predicated region
      $region25: #{tpu_custom_call.1} parent=5 // pred_check
        _
      $region26: #{tpu_custom_call.1} parent=5 // pred_check_branch
        %155 = sbr.rel (%p152) target = $region28
      $region27: #{tpu_custom_call.1} parent=5 // pred_region
        %s156 = ssub.s32 %s17, 1
        %s157 = sand.u32 %s30, 1
        %s158 = scalar_lea.sflag [#allocation3], %s157
        %s159 = sand.u32 %s30, 1
        %s160 = smul.addr %s159, 8
        %s161 = scalar_lea.vmem [#allocation2], %s160
        // Predicated region
        $region29: #{tpu_custom_call.1} parent=27 // pred_check
          %p162 = pneg %p43
        $region30: #{tpu_custom_call.1} parent=27 // pred_check_branch
          %164 = sbr.rel (%p162) target = $region32
        $region31: #{tpu_custom_call.1} parent=27 // pred_region
          %165 = dma.done %s158, 128
        $region32: #{tpu_custom_call.1} parent=27 // pred_fallthru
          _
        %s166 = sand.u32 %s56, 1
        %s167 = scalar_lea.sflag [#allocation6], %s166
        %s168 = sand.u32 %s56, 1
        %s169 = smul.addr %s168, 8
        %s170 = scalar_lea.vmem [#allocation5], %s169
        // Predicated region
        $region33: #{tpu_custom_call.1} parent=27 // pred_check
          %p171 = pneg %p69
        $region34: #{tpu_custom_call.1} parent=27 // pred_check_branch
          %173 = sbr.rel (%p171) target = $region36
        $region35: #{tpu_custom_call.1} parent=27 // pred_region
          %174 = dma.done %s167, 128
        $region36: #{tpu_custom_call.1} parent=27 // pred_fallthru
          _
        %s175 = sand.u32 %s30, 1
        %s176 = scalar_lea.sflag [#allocation3], %s175
        %s177 = sand.u32 %s30, 1
        %s178 = smul.addr %s177, 8
        %s179 = scalar_lea.vmem [#allocation2], %s178
        %p180 = pneg %p43
        %p181 = pneg %p40
        %s182 = sand.u32 %s56, 1
        %s183 = scalar_lea.sflag [#allocation6], %s182
        %s184 = sand.u32 %s56, 1
        %s185 = smul.addr %s184, 8
        %s186 = scalar_lea.vmem [#allocation5], %s185
        %p187 = pneg %p69
        %p188 = pneg %p66
        %p189 = pneg %p95
        %p190 = pneg %p92
        %s191 = sand.u32 %s82, 1
        %s192 = scalar_lea.sflag [#allocation4], %s191
        %s193 = sand.u32 %s82, 1
        %s194 = smul.addr %s193, 8
        %s195 = scalar_lea.vmem [#allocation7], %s194
        %v196 = vld [vmem:[%s161] sm:$0xff]
        %v197 = vld [vmem:[%s170] sm:$0xff]
        %v198 = vadd.f32 %v196, %v197
        %vm199 = vcmask 261120
        %200 = vst.msk [vmem:[%s195] sm:$0xff] %vm199, %v198
        %s201 = sand.u32 %s82, 1
        %s202 = scalar_lea.sflag [#allocation4], %s201
        %s203 = sand.u32 %s82, 1
        %s204 = smul.addr %s203, 8
        %s205 = scalar_lea.vmem [#allocation7], %s204
        // Predicated region
        $region37: #{tpu_custom_call.1} parent=27 // pred_check
          %p206 = pneg %p92
        $region38: #{tpu_custom_call.1} parent=27 // pred_check_branch
          %208 = sbr.rel (%p206) target = $region40
        $region39: #{tpu_custom_call.1} parent=27 // pred_region
          %s210 = ssub.s32 128, 128
          %211 = vsyncadd %s202, %s210
          %s212 = smul.addr %s22, 128
          %s213 = scalar_lea.hbm %s2, %s212
          %s215 = sshll.u32 %s205, 4
          %s216 = int_to_ptr.vmem [resolvable:$true] %s215
          %218 = dma.vmem_to_hbm [thread:$0]  %s216, 128, %s213, %s202
        $region40: #{tpu_custom_call.1} parent=27 // pred_fallthru
          _
      $region28: #{tpu_custom_call.1} parent=5 // pred_fallthru
        _
      %p219 = scmp.le.s32.totalorder 2, %s17
      // Predicated region
      $region41: #{tpu_custom_call.1} parent=5 // pred_check
        %p220 = pneg %p219
      $region42: #{tpu_custom_call.1} parent=5 // pred_check_branch
        %222 = sbr.rel (%p220) target = $region44
      $region43: #{tpu_custom_call.1} parent=5 // pred_region
        %s223 = ssub.s32 %s17, 2
        // Predicated region
        $region45: #{tpu_custom_call.1} parent=43 // pred_check
          %p224 = pneg %p98
        $region46: #{tpu_custom_call.1} parent=43 // pred_check_branch
          %226 = sbr.rel (%p224) target = $region48
        $region47: #{tpu_custom_call.1} parent=43 // pred_region
          %s227 = sand.u32 %s83, 1
          %s228 = scalar_lea.sflag [#allocation4], %s227
          %s229 = sand.u32 %s83, 1
          %s230 = smul.addr %s229, 8
          %s231 = scalar_lea.vmem [#allocation7], %s230
          %232 = dma.done %s228, 128
        $region48: #{tpu_custom_call.1} parent=43 // pred_fallthru
          _
      $region44: #{tpu_custom_call.1} parent=5 // pred_fallthru
        _
    $region6: #{tpu_custom_call.1} parent=1 // loop_footer
      %s21 = sadd.s32 1, %s17
    $region7: #{tpu_custom_call.1} parent=1 // loop_footer_branch
      %16 = sbr.rel target = $region3
    $region8: #{tpu_custom_call.1} parent=1 // loop_exit
      _
    %233 = vsyncpa [#allocation3], 1
    %s234 = scalar_lea.sflag [#allocation3], 1
    %235 = vsyncpa %s234, 1
    %236 = vsyncpa [#allocation6], 1
    %s237 = scalar_lea.sflag [#allocation6], 1
    %238 = vsyncpa %s237, 1
    %239 = vsyncpa [#allocation4], 1
    %s240 = scalar_lea.sflag [#allocation4], 1
    %241 = vsyncpa %s240, 1

</llo_original>
